<compile_context>
chip_gen: v7x
topology: tpu7x:2x2x1
jax: 0.10.0
libtpu: 0.0.40
codegen_flags: <defaults>
</compile_context>

<pallas_src>
import jax
import jax.numpy as jnp
from jax.experimental import pallas as pl
from jax.experimental.pallas import tpu as pltpu

_MIB = 1024 * 1024
_SUB = 8
_LANE = 128


# ----------------------------------------------------------------------------
# Glue: angle-axis -> rotation matrix (kornia-style Rodrigues with Taylor
# fallback for small angles).  Tiny per-batch parameter setup, stays in JAX.
# ----------------------------------------------------------------------------
def angle_axis_to_rotation_matrix(aa, eps=1e-6):
    # aa: (..., 3) -> (..., 3, 3)
    theta2 = jnp.sum(aa * aa, axis=-1)                      # (...,)
    theta = jnp.sqrt(theta2)
    w = aa / (theta[..., None] + eps)
    wx, wy, wz = w[..., 0], w[..., 1], w[..., 2]
    c = jnp.cos(theta)
    s = jnp.sin(theta)
    one_c = 1.0 - c
    R = jnp.stack(
        [
            c + wx * wx * one_c, wx * wy * one_c - wz * s, wy * s + wx * wz * one_c,
            wz * s + wx * wy * one_c, c + wy * wy * one_c, -wx * s + wy * wz * one_c,
            -wy * s + wx * wz * one_c, wx * s + wy * wz * one_c, c + wz * wz * one_c,
        ],
        axis=-1,
    ).reshape(aa.shape[:-1] + (3, 3))

    rx, ry, rz = aa[..., 0], aa[..., 1], aa[..., 2]
    one = jnp.ones_like(rx)
    R_taylor = jnp.stack(
        [one, -rz, ry, rz, one, -rx, -ry, rx, one], axis=-1
    ).reshape(aa.shape[:-1] + (3, 3))

    use_exact = (theta2 > eps)[..., None, None]
    return jnp.where(use_exact, R, R_taylor)


# ----------------------------------------------------------------------------
# VMEM planning (generation aware).
# ----------------------------------------------------------------------------
def _vmem_plan():
    """Returns (per-step P+C tile byte budget, vmem_limit_bytes)."""
    try:
        cap = int(pltpu.get_tpu_info().vmem_capacity_bytes)
    except Exception:
        cap = 128 * _MIB
    if cap <= 64 * _MIB:
        # v7x-class chip: 64 MiB physical VMEM.  ~24 MiB of double-buffered
        # inputs; keep the scoped limit well under the physical ceiling so
        # Mosaic internal scratch has headroom.
        return 12 * _MIB, 48 * _MIB
    # v5e / v6e: 128 MiB physical VMEM.
    return 12 * _MIB, 64 * _MIB


def _plan_tiles(M, N, pair_bytes, budget):
    """Pick (tm, tn): tm a multiple of 8 (or full M when M < 8); tn = N, or a
    multiple of 128 when N is so wide that full-N blocks would force tm below
    ~512 rows under the byte budget.  Tails are masked in-kernel, so neither
    tile has to divide its axis."""
    TARGET_ROWS = 512
    tm_cap = M if M < _SUB else (M // _SUB) * _SUB
    rows_full_n = max(_SUB, (budget // max(N * pair_bytes, 1)) // _SUB * _SUB)
    if N <= _LANE or rows_full_n >= min(TARGET_ROWS, tm_cap):
        tn = N
    else:
        tn_cap = (N // _LANE) * _LANE
        want_tn = (budget // (min(TARGET_ROWS, tm_cap) * pair_bytes)) // _LANE * _LANE
        tn = int(max(_LANE, min(tn_cap, want_tn)))
    rows = max(_SUB, (budget // max(tn * pair_bytes, 1)) // _SUB * _SUB)
    tm = int(min(tm_cap, rows))
    return tm, tn


# ----------------------------------------------------------------------------
# Pallas kernel: per-(batch, split) correspondence reduction.
#   grid = (B, S, NM, NN); b/s "parallel", m/n "arbitrary" (same accumulator).
# ----------------------------------------------------------------------------
def _make_corr_kernel(tm, tn, M, N, nm_per_split, nn_tiles, c_is_binary,
                      mask_rows, mask_cols):
    fold = (tm % _SUB == 0)

    def signed_vals(p, c):
        # (1 - 2*C) * P.  Exact fast path when C is a 0/1 int/bool indicator
        # (no cast, no multiply); general formula otherwise.
        if c_is_binary:
            return jnp.where(c != 0, -p, p)
        return p - 2.0 * (c.astype(jnp.float32) * p)

    def accumulate(acc_ref, vals):
        if fold:
            # Sublane-fold into the (8, tn) accumulator — pure VPU vreg adds,
            # no per-step XLU cross-lane reduce.
            acc_ref[...] += jnp.sum(vals.reshape(tm // _SUB, _SUB, tn), axis=0)
        else:
            # Tiny-M fallback (M < 8): single-row accumulator slice.
            acc_ref[0:1, :] += jnp.sum(vals, axis=0, keepdims=True)

    def kernel(p_ref, c_ref, out_ref, acc_ref):
        s = pl.program_id(1)
        m = pl.program_id(2)
        n = pl.program_id(3)

        @pl.when(jnp.logical_and(m == 0, n == 0))
        def _():
            acc_ref[...] = jnp.zeros_like(acc_ref)

        p = p_ref[0].astype(jnp.float32)   # (tm, tn); f32 accumulation
        c = c_ref[0]                       # native dtype (f32 / bf16 / int8 / bool)

        if mask_rows or mask_cols:
            rows_rem = M - (s * nm_per_split + m) * tm
            cols_rem = N - n * tn
            if mask_rows and mask_cols:
                needs_mask = jnp.logical_or(rows_rem < tm, cols_rem < tn)
            elif mask_rows:
                needs_mask = rows_rem < tm
            else:
                needs_mask = cols_rem < tn

            @pl.when(jnp.logical_not(needs_mask))
            def _():
                accumulate(acc_ref, signed_vals(p, c))

            @pl.when(needs_mask)
            def _():
                mask = None
                if mask_rows:
                    rid = jax.lax.broadcasted_iota(jnp.int32, (tm, tn), 0)
                    mask = rid < rows_rem
                if mask_cols:
                    cid = jax.lax.broadcasted_iota(jnp.int32, (tm, tn), 1)
                    cmask = cid < cols_rem
                    mask = cmask if mask is None else jnp.logical_and(mask, cmask)
                vals = jnp.where(mask, signed_vals(p, c), 0.0)
                accumulate(acc_ref, vals)
        else:
            accumulate(acc_ref, signed_vals(p, c))

        @pl.when(jnp.logical_and(m == nm_per_split - 1, n == nn_tiles - 1))
        def _():
            out_ref[...] = jnp.sum(acc_ref[...]).reshape(1, 1, 1, 1)

    return kernel


def _correspondence_sums(P, C_gt):
    """Per-batch sum((1 - 2*C_gt) * P), accumulated in f32.

    Caller contract: C_gt may be float (as in the torch module) OR an
    int8/bool 0-1 indicator — the latter shrinks the HBM stream ~4x; the
    kernel upcasts/handles it in VMEM, no wrapper-side astype pass is added.
    """
    B, M, N = P.shape
    pair_bytes = P.dtype.itemsize + C_gt.dtype.itemsize
    budget, vmem_limit = _vmem_plan()
    tm, tn = _plan_tiles(M, N, pair_bytes, budget)

    nm_total = pl.cdiv(M, tm)
    nn = pl.cdiv(N, tn)
    # v7x has 2 TensorCores; when B == 1 the M reduction is split across a
    # second "parallel" axis so both cores are busy (S == 1 elsewhere).
    S = 2 if (B == 1 and nm_total >= 2) else 1
    nm = pl.cdiv(nm_total, S)

    clamp_m = (S * nm != nm_total)               # split padding exists
    mask_rows = (M % tm != 0) or clamp_m
    mask_cols = (N % tn != 0)
    c_is_binary = (C_gt.dtype == jnp.bool_) or jnp.issubdtype(C_gt.dtype, jnp.integer)

    def in_index(b, s, m, n):
        gm = s * nm + m
        if clamp_m:
            gm = jnp.minimum(gm, nm_total - 1)   # padded tiles: clamp, fully masked
        return (b, gm, n)

    kernel = _make_corr_kernel(tm, tn, M, N, nm, nn, c_is_binary,
                               mask_rows, mask_cols)

    partials = pl.pallas_call(
        kernel,
        out_shape=jax.ShapeDtypeStruct((B, S, 1, 1), jnp.float32),
        grid=(B, S, nm, nn),
        in_specs=[
            pl.BlockSpec((1, tm, tn), in_index),   # P (native dtype)
            pl.BlockSpec((1, tm, tn), in_index),   # C_gt (native dtype)
        ],
        out_specs=pl.BlockSpec((1, 1, 1, 1), lambda b, s, m, n: (b, s, 0, 0)),
        scratch_shapes=[pltpu.VMEM((_SUB, tn), jnp.float32)],
        compiler_params=pltpu.CompilerParams(
            dimension_semantics=("parallel", "parallel", "arbitrary", "arbitrary"),
            vmem_limit_bytes=vmem_limit),
    )(P, C_gt)
    return partials.reshape(B, S).sum(axis=-1)


# ----------------------------------------------------------------------------
# TotalLoss.forward equivalent.
# ----------------------------------------------------------------------------
def total_loss(theta, P, R_gt, t_gt, C_gt, gamma=0.5,
               max_rotation_angle=1.570796, max_translation_error=1.0,
               eps=1e-7):
    # TODO(synk): torch.nn.BCELoss is constructed in __init__ but never used in
    # forward, so it is intentionally not implemented.
    corr_loss = jnp.mean(_correspondence_sums(P, C_gt))

    if gamma > 0.0:
        R = angle_axis_to_rotation_matrix(theta[..., :3]).astype(jnp.float32)
        t = theta[..., 3:].astype(jnp.float32)

        # Rotation error: acos(clamp(0.5*(sum(R*R_gt) - 1))) — tiny, fused by XLA.
        rot_dots = jnp.einsum('bij,bij->b', R, R_gt.astype(jnp.float32))
        max_dot = 1.0 - eps
        cosang = jnp.clip(0.5 * (rot_dots - 1.0), -max_dot, max_dot)
        rot_loss = jnp.mean(jnp.minimum(jnp.arccos(cosang), max_rotation_angle))

        # Translation error: ||t - t_gt||_2, clamped, mean.
        d = t - t_gt.astype(jnp.float32)
        trans_err = jnp.sqrt(jnp.sum(d * d, axis=-1))
        trans_loss = jnp.mean(jnp.minimum(trans_err, max_translation_error))

        losses = jnp.stack([corr_loss, rot_loss, trans_loss])
        loss = losses[0] + gamma * (losses[1] + losses[2])
    else:
        losses = corr_loss.reshape(1)
        loss = losses[0]
    return loss, losses


if __name__ == "__main__":
    key = jax.random.PRNGKey(0)
    B, M, N = 2, 16, 16
    k1, k2, k3, k4, k5 = jax.random.split(key, 5)

    # Predicted pose parameters: angle-axis (3) + translation (3).
    theta = 0.3 * jax.random.normal(k1, (B, 6), dtype=jnp.float32)

    # Correspondence probability matrix P (soft assignment).
    logits = jax.random.normal(k2, (B, M, N), dtype=jnp.float32)
    P = jax.nn.softmax(logits.reshape(B, -1), axis=-1).reshape(B, M, N)

    # Ground-truth correspondence indicator matrix (0/1), float as in torch.
    C_gt = (jax.random.uniform(k3, (B, M, N)) < 0.1).astype(jnp.float32)

    # Ground-truth rotation (valid SO(3) matrices) and translation.
    aa_gt = 0.3 * jax.random.normal(k4, (B, 3), dtype=jnp.float32)
    R_gt = angle_axis_to_rotation_matrix(aa_gt)
    t_gt = jax.random.normal(k5, (B, 3), dtype=jnp.float32)

    loss, losses = total_loss(theta, P, R_gt, t_gt, C_gt, gamma=0.5)
    jax.block_until_ready((loss, losses))

    # Sanity check of the Pallas reduction against plain JAX.
    ref_corr = jnp.mean(jnp.sum((1.0 - 2.0 * C_gt) * P, axis=(-2, -1)))
    assert jnp.allclose(losses[0], ref_corr, rtol=1e-4, atol=1e-5), (losses[0], ref_corr)

    print("KERNEL_OK")
</pallas_src>

<mosaic_0001>
module attributes {stable_mosaic.version = 11 : i64} {
  func.func @kernel(%arg0: i32, %arg1: i32, %arg2: i32, %arg3: i32, %arg4: memref<1x16x16xf32, #tpu.memory_space<vmem>>, %arg5: memref<1x16x16xf32, #tpu.memory_space<vmem>>, %arg6: memref<1x1x1x1xf32, #tpu.memory_space<vmem>>, %arg7: memref<8x16xf32, #tpu.memory_space<vmem>>) attributes {dimension_semantics = [#tpu.dimension_semantics<parallel>, #tpu.dimension_semantics<parallel>, #tpu.dimension_semantics<arbitrary>, #tpu.dimension_semantics<arbitrary>], iteration_bounds = array<i64: 2, 1, 1, 1>, scalar_prefetch = 0 : i64, scratch_operands = 1 : i64, tpu.core_type = #tpu.core_type<tc>, window_params = [{transform_indices = @transform_0, window_bounds = array<i64: 1, 16, 16>}, {transform_indices = @transform_1, window_bounds = array<i64: 1, 16, 16>}, {transform_indices = @transform_2, window_bounds = array<i64: 1, 1, 1, 1>}]} {
    %c0_i32 = arith.constant 0 : i32
    %0 = arith.cmpi eq, %arg2, %c0_i32 : i32
    %c0_i32_0 = arith.constant 0 : i32
    %1 = arith.cmpi eq, %arg3, %c0_i32_0 : i32
    %2 = arith.andi %0, %1 : i1
    %3 = arith.extui %2 : i1 to i32
    %c0_i32_1 = arith.constant 0 : i32
    %4 = arith.cmpi ne, %3, %c0_i32_1 : i32
    scf.if %4 {
      %cst_15 = arith.constant 0.000000e+00 : f32
      %23 = vector.broadcast %cst_15 : f32 to vector<8x16xf32>
      %c0_16 = arith.constant 0 : index
      %c0_17 = arith.constant 0 : index
      %24 = vector.load %arg7[%c0_16, %c0_17] : memref<8x16xf32, #tpu.memory_space<vmem>>, vector<8x16xf32>
      tpu.vector_store %arg7[%c0_16, %c0_17], %23 {strides = array<i32>} : memref<8x16xf32, #tpu.memory_space<vmem>>, vector<8x16xf32>,
    } else {
    }
    %c0 = arith.constant 0 : index
    %c0_2 = arith.constant 0 : index
    %c0_3 = arith.constant 0 : index
    %5 = vector.load %arg4[%c0, %c0_2, %c0_3] : memref<1x16x16xf32, #tpu.memory_space<vmem>>, vector<1x16x16xf32>
    %6 = vector.shape_cast %5 : vector<1x16x16xf32> to vector<16x16xf32>
    %c0_4 = arith.constant 0 : index
    %c0_5 = arith.constant 0 : index
    %c0_6 = arith.constant 0 : index
    %7 = vector.load %arg5[%c0_4, %c0_5, %c0_6] : memref<1x16x16xf32, #tpu.memory_space<vmem>>, vector<1x16x16xf32>
    %8 = vector.shape_cast %7 : vector<1x16x16xf32> to vector<16x16xf32>
    %9 = arith.mulf %8, %6 : vector<16x16xf32>
    %cst = arith.constant 2.000000e+00 : f32
    %10 = vector.broadcast %cst : f32 to vector<16x16xf32>
    %11 = arith.mulf %10, %9 : vector<16x16xf32>
    %12 = arith.subf %6, %11 : vector<16x16xf32>
    %c0_7 = arith.constant 0 : index
    %c0_8 = arith.constant 0 : index
    %13 = vector.load %arg7[%c0_7, %c0_8] : memref<8x16xf32, #tpu.memory_space<vmem>>, vector<8x16xf32>
    %14 = vector.shape_cast %12 : vector<16x16xf32> to vector<2x8x16xf32>
    %cst_9 = arith.constant dense<0.000000e+00> : vector<8x16xf32>
    %15 = vector.multi_reduction <add>, %14, %cst_9 [0] : vector<2x8x16xf32> to vector<8x16xf32>
    %16 = arith.addf %13, %15 : vector<8x16xf32>
    %c0_10 = arith.constant 0 : index
    %c0_11 = arith.constant 0 : index
    %17 = vector.load %arg7[%c0_10, %c0_11] : memref<8x16xf32, #tpu.memory_space<vmem>>, vector<8x16xf32>
    tpu.vector_store %arg7[%c0_10, %c0_11], %16 {strides = array<i32>} : memref<8x16xf32, #tpu.memory_space<vmem>>, vector<8x16xf32>,
    %c0_i32_12 = arith.constant 0 : i32
    %18 = arith.cmpi eq, %arg2, %c0_i32_12 : i32
    %c0_i32_13 = arith.constant 0 : i32
    %19 = arith.cmpi eq, %arg3, %c0_i32_13 : i32
    %20 = arith.andi %18, %19 : i1
    %21 = arith.extui %20 : i1 to i32
    %c0_i32_14 = arith.constant 0 : i32
    %22 = arith.cmpi ne, %21, %c0_i32_14 : i32
    scf.if %22 {
      %c0_15 = arith.constant 0 : index
      %c0_16 = arith.constant 0 : index
      %23 = vector.load %arg7[%c0_15, %c0_16] : memref<8x16xf32, #tpu.memory_space<vmem>>, vector<8x16xf32>
      %24 = vector.shape_cast %23 : vector<8x16xf32> to vector<1x8x16xf32>
      %cst_17 = arith.constant dense<0.000000e+00> : vector<1xf32>
      %25 = vector.multi_reduction <add>, %24, %cst_17 [1, 2] : vector<1x8x16xf32> to vector<1xf32>
      %26 = vector.shape_cast %25 : vector<1xf32> to vector<1x1x1xf32>
      %27 = vector.extract %26[0, 0, 0] : f32 from vector<1x1x1xf32>
      %28 = vector.broadcast %27 : f32 to vector<1x1x1x1xf32>
      %c0_18 = arith.constant 0 : index
      %c0_19 = arith.constant 0 : index
      %c0_20 = arith.constant 0 : index
      %c0_21 = arith.constant 0 : index
      %29 = vector.load %arg6[%c0_18, %c0_19, %c0_20, %c0_21] : memref<1x1x1x1xf32, #tpu.memory_space<vmem>>, vector<1x1x1x1xf32>
      tpu.vector_store %arg6[%c0_18, %c0_19, %c0_20, %c0_21], %28 {strides = array<i32>} : memref<1x1x1x1xf32, #tpu.memory_space<vmem>>, vector<1x1x1x1xf32>,
    } else {
    }
    return
  }
  func.func @transform_0(%arg0: i32, %arg1: i32, %arg2: i32, %arg3: i32) -> (i32, i32, i32) {
    %c1_i32 = arith.constant 1 : i32
    %0 = arith.muli %arg1, %c1_i32 : i32
    %1 = arith.addi %0, %arg2 : i32
    %c0_i32 = arith.constant 0 : i32
    return %arg0, %1, %arg3 : i32, i32, i32
  }
  func.func @transform_1(%arg0: i32, %arg1: i32, %arg2: i32, %arg3: i32) -> (i32, i32, i32) {
    %c1_i32 = arith.constant 1 : i32
    %0 = arith.muli %arg1, %c1_i32 : i32
    %1 = arith.addi %0, %arg2 : i32
    %c0_i32 = arith.constant 0 : i32
    return %arg0, %1, %arg3 : i32, i32, i32
  }
  func.func @transform_2(%arg0: i32, %arg1: i32, %arg2: i32, %arg3: i32) -> (i32, i32, i32, i32) {
    %c0_i32 = arith.constant 0 : i32
    %c0_i32_0 = arith.constant 0 : i32
    %c0_i32_1 = arith.constant 0 : i32
    return %arg0, %arg1, %c0_i32, %c0_i32_0 : i32, i32, i32, i32
  }
}

</mosaic_0001>

<llo_original>
// kernel: tpu_custom_call.1
$region0: #{tpu_custom_call.1}
  #allocation0 [shape = 'u32[]', space=smem, size = 0x4, offset = 0x4, fixed_abs, tag = 'smem constant byte address 0x4 - core index']
  #allocation1 [shape = 'u32[144,128]{1,0:T(1,128)}', space=vmem, size = 0x12000, scoped, tag = 'internal scratch']
  #allocation2 [shape = 'f32[8,16]{1,0:T(8,128)}', space=vmem, size = 0x1000, scoped, tag = 'scratch operand']
  %s0 = inlined_call_operand.hbm [shape: f32[2,16,16], index: 0, kind: input, shape index: {}]
  %s1 = inlined_call_operand.hbm [shape: f32[2,16,16], index: 1, kind: input, shape index: {}]
  %s2 = inlined_call_operand.hbm [shape: f32[2,1,1,1], index: 2, kind: output, shape index: {}]
  %s3 = sld [smem:[#allocation0]]
  $region57: #{tpu_custom_call.1} parent=0
    _
  %s5 = ssub.s32 1, %s3
  %s6 = scalar_select 0, %s5, %s3
  $region1: #{tpu_custom_call.1} parent=0
    #allocation3 [shape = 'u8[16384]{0}', space=vmem, size = 0x4000, scoped, tag = 'input window, operand 0']
    #allocation4 [shape = 's32[2]{0}', space=sflag, size = 0x8, scoped, tag = 'scoped memory for tpu_custom_call.1']
    #allocation5 [shape = 's32[2]{0}', space=sflag, size = 0x8, scoped, tag = 'scoped memory for tpu_custom_call.1']
    #allocation6 [shape = 'u8[16384]{0}', space=vmem, size = 0x4000, scoped, tag = 'input window, operand 1']
    #allocation7 [shape = 's32[2]{0}', space=sflag, size = 0x8, scoped, tag = 'scoped memory for tpu_custom_call.1']
    #allocation8 [shape = 'u8[1024]{0}', space=vmem, size = 0x400, scoped, tag = 'output window, operand 0']
    %7 = vsyncpa [#allocation4], 0
    %s8 = scalar_lea.sflag [#allocation4], 1
    %9 = vsyncpa %s8, 0
    %10 = vsyncpa [#allocation7], 0
    %s11 = scalar_lea.sflag [#allocation7], 1
    %12 = vsyncpa %s11, 0
    %13 = vsyncpa [#allocation5], 0
    %s14 = scalar_lea.sflag [#allocation5], 1
    %15 = vsyncpa %s14, 0
    loop: start=0, step=1, limit=4
    $region2: #{tpu_custom_call.1} parent=1 // loop_pre_header
      _
    $region3: #{tpu_custom_call.1} parent=1 // loop_header
      %s17 = sphi 0, %s21
      %p18 = scmp.ge.s32.totalorder %s17, 4
      %s24 = sphi 0, %s50
      %s25 = sphi 0, %s46
      %s26 = sphi 0, %s42
      %s27 = sphi 0, %s38
      %s28 = sphi 0, %s24
      %s29 = sphi 0, %s25
      %s30 = sphi 0, %s26
      %s31 = sphi 0, %s27
      %s32 = sphi 0, %s28
      %s33 = sphi 0, %s29
      %s34 = sphi 0, %s30
      %s35 = sphi 0, %s31
      %s59 = sphi 0, %s61
      %s62 = sphi 0, %s59
      %s63 = sphi 0, %s62
      %s79 = sphi 0, %s63
      %s91 = sphi 0, %s93
      %s94 = sphi 0, %s91
      %s95 = sphi 0, %s94
      %s111 = sphi 0, %s95
      %s119 = sphi 0, %s121
      %s122 = sphi 0, %s119
      %s123 = sphi 0, %s122
      %s139 = sphi 0, %s123
    $region4: #{tpu_custom_call.1} parent=1 // loop_header_branch
      %20 = sbr.rel (%p18) target = $region8
    $region5: #{tpu_custom_call.1} parent=1 // loop_body
      %s22 = ssub.s32 %s17, 1
      %s23 = ssub.s32 %s17, 2
      %s36 = sadd.s32 1, %s27
      %p37 = scmp.ge.s32.totalorder %s36, 1
      %s38 = scalar_select %p37, 0, %s36
      %s39 = sadd.s32 1, %s26
      %s40 = scalar_select %p37, %s39, %s26
      %p41 = scmp.ge.s32.totalorder %s40, 1
      %s42 = scalar_select %p41, 0, %s40
      %s43 = sadd.s32 1, %s25
      %s44 = scalar_select %p41, %s43, %s25
      %p45 = scmp.ge.s32.totalorder %s44, 1
      %s46 = scalar_select %p45, 0, %s44
      %s47 = sadd.s32 1, %s24
      %s48 = scalar_select %p45, %s47, %s24
      %p49 = scmp.ge.s32.totalorder %s48, 2
      %s50 = scalar_select %p49, 0, %s48
      %s51 = sadd.s32 %s25, %s26
      %s52 = sadd.s32 %s46, %s42
      %s53 = ssub.s32 %s24, %s50
      %s54 = ssub.s32 %s51, %s52
      %s55 = sor.u32 %s53, %s54
      %s56 = ssub.s32 %s27, %s38
      %s57 = sor.u32 %s55, %s56
      %p58 = scmp.eq.s32.totalorder %s57, 0
      %s60 = sadd.s32 %s59, 1
      %s61 = scalar_select %p58, %s59, %s60
      %p64 = pneg %p58
      %p65 = scmp.eq.s32.totalorder %s17, 1
      %p66 = por %p64, %p65
      %p67 = scmp.ne.s32.totalorder %s59, %s62
      %p68 = scmp.eq.s32.totalorder %s17, 0
      %p69 = por %p67, %p68
      %p70 = scmp.ne.s32.totalorder %s59, %s62
      %p71 = scmp.eq.s32.totalorder %s22, 1
      %p72 = por %p70, %p71
      %p73 = scmp.ne.s32.totalorder %s62, %s63
      %p74 = scmp.eq.s32.totalorder %s22, 0
      %p75 = por %p73, %p74
      %p76 = scmp.ne.s32.totalorder %s62, %s63
      %p77 = scmp.eq.s32.totalorder %s23, 1
      %p78 = por %p76, %p77
      %p80 = scmp.ne.s32.totalorder %s63, %s79
      %p81 = scmp.eq.s32.totalorder %s23, 0
      %p82 = por %p80, %p81
      %s83 = sadd.s32 %s25, %s26
      %s84 = sadd.s32 %s46, %s42
      %s85 = ssub.s32 %s24, %s50
      %s86 = ssub.s32 %s83, %s84
      %s87 = sor.u32 %s85, %s86
      %s88 = ssub.s32 %s27, %s38
      %s89 = sor.u32 %s87, %s88
      %p90 = scmp.eq.s32.totalorder %s89, 0
      %s92 = sadd.s32 %s91, 1
      %s93 = scalar_select %p90, %s91, %s92
      %p96 = pneg %p90
      %p97 = scmp.eq.s32.totalorder %s17, 1
      %p98 = por %p96, %p97
      %p99 = scmp.ne.s32.totalorder %s91, %s94
      %p100 = scmp.eq.s32.totalorder %s17, 0
      %p101 = por %p99, %p100
      %p102 = scmp.ne.s32.totalorder %s91, %s94
      %p103 = scmp.eq.s32.totalorder %s22, 1
      %p104 = por %p102, %p103
      %p105 = scmp.ne.s32.totalorder %s94, %s95
      %p106 = scmp.eq.s32.totalorder %s22, 0
      %p107 = por %p105, %p106
      %p108 = scmp.ne.s32.totalorder %s94, %s95
      %p109 = scmp.eq.s32.totalorder %s23, 1
      %p110 = por %p108, %p109
      %p112 = scmp.ne.s32.totalorder %s95, %s111
      %p113 = scmp.eq.s32.totalorder %s23, 0
      %p114 = por %p112, %p113
      %s115 = ssub.s32 %s24, %s50
      %s116 = ssub.s32 %s25, %s46
      %s117 = sor.u32 %s115, %s116
      %p118 = scmp.eq.s32.totalorder %s117, 0
      %s120 = sadd.s32 %s119, 1
      %s121 = scalar_select %p118, %s119, %s120
      %p124 = pneg %p118
      %p125 = scmp.eq.s32.totalorder %s17, 1
      %p126 = por %p124, %p125
      %p127 = scmp.ne.s32.totalorder %s119, %s122
      %p128 = scmp.eq.s32.totalorder %s17, 0
      %p129 = por %p127, %p128
      %p130 = scmp.ne.s32.totalorder %s119, %s122
      %p131 = scmp.eq.s32.totalorder %s22, 1
      %p132 = por %p130, %p131
      %p133 = scmp.ne.s32.totalorder %s122, %s123
      %p134 = scmp.eq.s32.totalorder %s22, 0
      %p135 = por %p133, %p134
      %p136 = scmp.ne.s32.totalorder %s122, %s123
      %p137 = scmp.eq.s32.totalorder %s23, 1
      %p138 = por %p136, %p137
      %p140 = scmp.ne.s32.totalorder %s123, %s139
      %p141 = scmp.eq.s32.totalorder %s23, 0
      %p142 = por %p140, %p141
      %p143 = scmp.le.s32.totalorder 1, %s17
      %p144 = scmp.lt.s32.totalorder %s17, 3
      %p145 = pnand %p143, %p144
      %p146 = pneg %p145
      // Predicated region
      $region9: #{tpu_custom_call.1} parent=5 // pred_check
        _
      $region10: #{tpu_custom_call.1} parent=5 // pred_check_branch
        %148 = sbr.rel (%p145) target = $region12
      $region11: #{tpu_custom_call.1} parent=5 // pred_region
        %s149 = ssub.s32 %s17, 1
      $region12: #{tpu_custom_call.1} parent=5 // pred_fallthru
        _
      %p150 = scmp.lt.s32.totalorder %s17, 2
      // Predicated region
      $region13: #{tpu_custom_call.1} parent=5 // pred_check
        %p151 = pneg %p150
      $region14: #{tpu_custom_call.1} parent=5 // pred_check_branch
        %153 = sbr.rel (%p151) target = $region16
      $region15: #{tpu_custom_call.1} parent=5 // pred_region
        // Predicated region
        $region17: #{tpu_custom_call.1} parent=15 // pred_check
          %p154 = pneg %p69
        $region18: #{tpu_custom_call.1} parent=15 // pred_check_branch
          %156 = sbr.rel (%p154) target = $region20
        $region19: #{tpu_custom_call.1} parent=15 // pred_region
          %s157 = sand.u32 %s59, 1
          %s158 = scalar_lea.sflag [#allocation4], %s157
          %s159 = sand.u32 %s59, 1
          %s160 = smul.addr %s159, 16
          %s161 = scalar_lea.vmem [#allocation3], %s160
          %s162 = sadd.s32 %s25, %s26
          %s163 = smul.u32 2, %s162
          %s165 = ssub.s32 256, 256
          %166 = vsyncadd %s158, %s165
          %s167 = sadd.s32 %s27, %s163
          %s168 = smul.addr %s24, 2
          %s169 = sadd.s32 %s167, %s168
          %s170 = smul.addr %s169, 128
          %s171 = scalar_lea.hbm %s0, %s170
          %s172 = sshll.u32 %s161, 4
          %s173 = int_to_ptr.vmem [resolvable:$true] %s172
          %178 = dma.hbm_to_vmem [thread:$0]  %s171, 256, %s173, %s158, 128, 128, 8
        $region20: #{tpu_custom_call.1} parent=15 // pred_fallthru
          _
        // Predicated region
        $region21: #{tpu_custom_call.1} parent=15 // pred_check
          %p179 = pneg %p101
        $region22: #{tpu_custom_call.1} parent=15 // pred_check_branch
          %181 = sbr.rel (%p179) target = $region24
        $region23: #{tpu_custom_call.1} parent=15 // pred_region
          %s182 = sand.u32 %s91, 1
          %s183 = scalar_lea.sflag [#allocation7], %s182
          %s184 = sand.u32 %s91, 1
          %s185 = smul.addr %s184, 16
          %s186 = scalar_lea.vmem [#allocation6], %s185
          %s187 = sadd.s32 %s25, %s26
          %s188 = smul.u32 2, %s187
          %s190 = ssub.s32 256, 256
          %191 = vsyncadd %s183, %s190
          %s192 = sadd.s32 %s27, %s188
          %s193 = smul.addr %s24, 2
          %s194 = sadd.s32 %s192, %s193
          %s195 = smul.addr %s194, 128
          %s196 = scalar_lea.hbm %s1, %s195
          %s197 = sshll.u32 %s186, 4
          %s198 = int_to_ptr.vmem [resolvable:$true] %s197
          %203 = dma.hbm_to_vmem [thread:$0]  %s196, 256, %s198, %s183, 128, 128, 8
        $region24: #{tpu_custom_call.1} parent=15 // pred_fallthru
          _
      $region16: #{tpu_custom_call.1} parent=5 // pred_fallthru
        _
      %p204 = scmp.le.s32.totalorder 1, %s17
      %p205 = scmp.lt.s32.totalorder %s17, 3
      %p206 = pnand %p204, %p205
      %p207 = pneg %p206
      // Predicated region
      $region25: #{tpu_custom_call.1} parent=5 // pred_check
        _
      $region26: #{tpu_custom_call.1} parent=5 // pred_check_branch
        %209 = sbr.rel (%p206) target = $region28
      $region27: #{tpu_custom_call.1} parent=5 // pred_region
        %s210 = ssub.s32 %s17, 1
        %s211 = sand.u32 %s62, 1
        %s212 = scalar_lea.sflag [#allocation4], %s211
        %s213 = sand.u32 %s62, 1
        %s214 = smul.addr %s213, 16
        %s215 = scalar_lea.vmem [#allocation3], %s214
        // Predicated region
        $region29: #{tpu_custom_call.1} parent=27 // pred_check
          %p216 = pneg %p75
        $region30: #{tpu_custom_call.1} parent=27 // pred_check_branch
          %218 = sbr.rel (%p216) target = $region32
        $region31: #{tpu_custom_call.1} parent=27 // pred_region
          %219 = dma.done %s212, 256
        $region32: #{tpu_custom_call.1} parent=27 // pred_fallthru
          _
        %s220 = sand.u32 %s94, 1
        %s221 = scalar_lea.sflag [#allocation7], %s220
        %s222 = sand.u32 %s94, 1
        %s223 = smul.addr %s222, 16
        %s224 = scalar_lea.vmem [#allocation6], %s223
        // Predicated region
        $region33: #{tpu_custom_call.1} parent=27 // pred_check
          %p225 = pneg %p107
        $region34: #{tpu_custom_call.1} parent=27 // pred_check_branch
          %227 = sbr.rel (%p225) target = $region36
        $region35: #{tpu_custom_call.1} parent=27 // pred_region
          %228 = dma.done %s221, 256
        $region36: #{tpu_custom_call.1} parent=27 // pred_fallthru
          _
        %s229 = sand.u32 %s62, 1
        %s230 = scalar_lea.sflag [#allocation4], %s229
        %s231 = sand.u32 %s62, 1
        %s232 = smul.addr %s231, 16
        %s233 = scalar_lea.vmem [#allocation3], %s232
        %p234 = pneg %p75
        %p235 = pneg %p72
        %s236 = sand.u32 %s94, 1
        %s237 = scalar_lea.sflag [#allocation7], %s236
        %s238 = sand.u32 %s94, 1
        %s239 = smul.addr %s238, 16
        %s240 = scalar_lea.vmem [#allocation6], %s239
        %p241 = pneg %p107
        %p242 = pneg %p104
        %p243 = pneg %p135
        %p244 = pneg %p132
        %s245 = sand.u32 %s122, 1
        %s246 = scalar_lea.sflag [#allocation5], %s245
        %s247 = sand.u32 %s122, 1
        %s248 = scalar_lea.vmem [#allocation8], %s247
        %s249 = sadd.s32 %s29, %s30
        %s250 = smul.u32 2, %s249
        %s251 = sadd.s32 %s29, %s30
        %s252 = smul.u32 2, %s251
        %p253 = scmp.eq.s32.totalorder %s30, 0
        %p254 = scmp.eq.s32.totalorder %s31, 0
        %p255 = pnand %p253, %p254
        %p256 = pneg %p255
        // Predicated region
        $region37: #{tpu_custom_call.1} parent=27 // pred_check
          _
        $region38: #{tpu_custom_call.1} parent=27 // pred_check_branch
          %258 = sbr.rel (%p255) target = $region40
        $region39: #{tpu_custom_call.1} parent=27 // pred_region
          %vm259 = vcmask 130048
          %260 = vst.msk [vmem:[#allocation2] sm:$0xff] %vm259, 0.0
        $region40: #{tpu_custom_call.1} parent=27 // pred_fallthru
          _
        %v261 = vld [vmem:[%s215] sm:$0xff]
        %v262 = vld [vmem:[%s215 + $0x8] sm:$0xff]
        %v263 = vld [vmem:[%s224] sm:$0xff]
        %v264 = vld [vmem:[%s224 + $0x8] sm:$0xff]
        %v265 = vmul.f32 %v263, %v261
        %v266 = vmul.f32 %v264, %v262
        %v267 = vmul.f32 %v265, 2.0
        %v268 = vmul.f32 %v266, 2.0
        %v269 = vsub.f32 %v261, %v267
        %v270 = vsub.f32 %v262, %v268
        %v271 = vld [vmem:[#allocation2] sm:$0xff]
        %vm272 = vcmask 130048
        %v273 = vsel %vm272, %v269, 0.0
        %v274 = vsel %vm272, %v270, 0.0
        %v275 = vadd.f32 %v273, %v274
        %v276 = vadd.f32 %v271, %v275
        %277 = vst.msk [vmem:[#allocation2] sm:$0xff] %vm272, %v276
        // Predicated region
        $region41: #{tpu_custom_call.1} parent=27 // pred_check
          _
        $region42: #{tpu_custom_call.1} parent=27 // pred_check_branch
          %279 = sbr.rel (%p255) target = $region44
        $region43: #{tpu_custom_call.1} parent=27 // pred_region
          %v280 = vld [vmem:[#allocation2] sm:$0xff]
          %v281 = vsel %vm272, %v280, 0.0
          %282 = vadd.xlane.f32.xlu0 %v281
          %v283 = vpop.xlane.xlu0 %282
          %v284 = vrot.slane %v283, 4
          %v285 = vadd.f32 %v283, %v284
          %v286 = vrot.slane %v285, 2
          %v287 = vadd.f32 %v285, %v286
          %v288 = vrot.slane %v287, 1
          %v289 = vadd.f32 %v287, %v288
          %s290 = vtos %v289
          %v291 = vstv %s290
          %vm292 = vcmask 0
          %293 = vst.msk [vmem:[%s248] sm:$0x1] %vm292, %v291
        $region44: #{tpu_custom_call.1} parent=27 // pred_fallthru
          _
        %s294 = sand.u32 %s122, 1
        %s295 = scalar_lea.sflag [#allocation5], %s294
        %s296 = sand.u32 %s122, 1
        %s297 = scalar_lea.vmem [#allocation8], %s296
        // Predicated region
        $region45: #{tpu_custom_call.1} parent=27 // pred_check
          %p298 = pneg %p132
        $region46: #{tpu_custom_call.1} parent=27 // pred_check_branch
          %300 = sbr.rel (%p298) target = $region48
        $region47: #{tpu_custom_call.1} parent=27 // pred_region
          %s302 = ssub.s32 16, 16
          %303 = vsyncadd %s295, %s302
          %s304 = sadd.s32 %s29, %s28
          %s305 = smul.addr %s304, 16
          %s306 = scalar_lea.hbm %s2, %s305
          %s308 = sshll.u32 %s297, 4
          %s309 = int_to_ptr.vmem [resolvable:$true] %s308
          %311 = dma.vmem_to_hbm [thread:$0]  %s309, 16, %s306, %s295
        $region48: #{tpu_custom_call.1} parent=27 // pred_fallthru
          _
      $region28: #{tpu_custom_call.1} parent=5 // pred_fallthru
        _
      %p312 = scmp.le.s32.totalorder 2, %s17
      // Predicated region
      $region49: #{tpu_custom_call.1} parent=5 // pred_check
        %p313 = pneg %p312
      $region50: #{tpu_custom_call.1} parent=5 // pred_check_branch
        %315 = sbr.rel (%p313) target = $region52
      $region51: #{tpu_custom_call.1} parent=5 // pred_region
        %s316 = ssub.s32 %s17, 2
        // Predicated region
        $region53: #{tpu_custom_call.1} parent=51 // pred_check
          %p317 = pneg %p138
        $region54: #{tpu_custom_call.1} parent=51 // pred_check_branch
          %319 = sbr.rel (%p317) target = $region56
        $region55: #{tpu_custom_call.1} parent=51 // pred_region
          %s320 = sand.u32 %s123, 1
          %s321 = scalar_lea.sflag [#allocation5], %s320
          %s322 = sand.u32 %s123, 1
          %s323 = scalar_lea.vmem [#allocation8], %s322
          %324 = dma.done %s321, 16
        $region56: #{tpu_custom_call.1} parent=51 // pred_fallthru
          _
      $region52: #{tpu_custom_call.1} parent=5 // pred_fallthru
        _
    $region6: #{tpu_custom_call.1} parent=1 // loop_footer
      %s21 = sadd.s32 1, %s17
    $region7: #{tpu_custom_call.1} parent=1 // loop_footer_branch
      %16 = sbr.rel target = $region3
    $region8: #{tpu_custom_call.1} parent=1 // loop_exit
      _
    %325 = vsyncpa [#allocation4], 1
    %s326 = scalar_lea.sflag [#allocation4], 1
    %327 = vsyncpa %s326, 1
    %328 = vsyncpa [#allocation7], 1
    %s329 = scalar_lea.sflag [#allocation7], 1
    %330 = vsyncpa %s329, 1
    %331 = vsyncpa [#allocation5], 1
    %s332 = scalar_lea.sflag [#allocation5], 1
    %333 = vsyncpa %s332, 1

</llo_original>
